<compile_context>
chip_gen: v7x
topology: tpu7x:2x2x1
jax: 0.10.0
libtpu: 0.0.40
codegen_flags: <defaults>
</compile_context>

<pallas_src>
import functools

import jax
import jax.numpy as jnp
from jax.experimental import pallas as pl
from jax.experimental.pallas import tpu as pltpu

# ----------------------------- config ---------------------------------------
INPUT_DIM = 32
OUTPUT_DIM = 32
NUM_KNOTS = 5
SPLINE_ORDER = 3
GRID_RANGE = (-1.0, 1.0)          # PyTorch default grid_range=None would crash; pick a range.
N_COEF = NUM_KNOTS + SPLINE_ORDER                 # = 8  (B-spline coefficients per input dim)
N_KNOT_PTS = NUM_KNOTS + 2 * SPLINE_ORDER + 1     # = 12 (knot vector length per input dim)

BATCH = 16
MAX_BATCH_TILE = 512


def _pick_batch_tile(batch):
    if batch > MAX_BATCH_TILE:
        return MAX_BATCH_TILE
    if batch > 64:
        # >=2 grid steps so both v7x TensorCores get work on the "parallel" axis.
        half = -(-batch // 2)
        return min(MAX_BATCH_TILE, ((half + 7) // 8) * 8)
    return batch  # tiny batch: single step; the call is overhead-bound anyway


# ----------------------------- kernel ---------------------------------------
def spline_linear_kernel(x_ref, coef_ref, w_ref, o_ref, *,
                         spline_order, n_slab_pad, n_coef):
    """Lane-dense B-spline basis build + one fused MXU contraction.

    x_ref:    (TB, D)            input tile
    coef_ref: (R, W)             packed constants, W = n_slab_pad * D:
                 row 0: order-0 interval lower knots t_j       (slab-major, dim-minor)
                 row 1: order-0 interval upper knots t_{j+1}
                 rows 2+4(k-1)+{0,1,2,3}: level-k affine coefs a,b,c,d so that
                   B_{j,k} = (x*a_j + b_j)*B_{j,k-1} + (x*c_j + d_j)*B_{j+1,k-1}
                 (zero on invalid / padded slabs -> they self-mask)
    w_ref:    (n_coef*D, O_pad)  scaled spline weights, slab-major/dim-minor,
                                 N zero-padded to a multiple of 128
    o_ref:    (TB, O_pad)        output tile
    """
    D = x_ref.shape[1]
    W = coef_ref.shape[1]
    x = x_ref[...]                                               # (TB, D)

    # Tile x across the slab axis, lane-dense: xt[:, j*D + d] = x[:, d].
    # Two-stage concat keeps the second stage 128-lane aligned.
    if (128 % D == 0) and (W % 128 == 0):
        x_al = jnp.concatenate([x] * (128 // D), axis=-1)        # (TB, 128)
        xt = jnp.concatenate([x_al] * (W // 128), axis=-1)       # (TB, W)
    else:
        xt = jnp.concatenate([x] * n_slab_pad, axis=-1)          # (TB, W)

    # order-0 bases: indicator of the half-open knot interval [t_j, t_{j+1}).
    lo = coef_ref[0]
    hi = coef_ref[1]
    bases = jnp.where((xt >= lo) & (xt < hi), 1.0, 0.0).astype(jnp.float32)

    # Cox-de Boor recursion: one full-width FMA pair per level; the j+1
    # neighbour comes from an XLU lane roll (wrap-around lands on zero coefs).
    for k in range(1, spline_order + 1):
        r = 2 + 4 * (k - 1)
        a = coef_ref[r + 0]
        b = coef_ref[r + 1]
        c = coef_ref[r + 2]
        d = coef_ref[r + 3]
        nbr = pltpu.roll(bases, shift=W - D, axis=1)   # out[:, l] = bases[:, (l+D) % W]
        bases = (xt * a + b) * bases + (xt * c + d) * nbr

    # First n_coef slabs hold B_{j,order}; 128-aligned static slice (no relayout).
    lhs = bases[:, : n_coef * D]                                 # (TB, n_coef*D)
    o_ref[...] = jnp.dot(lhs, w_ref[...], preferred_element_type=jnp.float32)


# ----------------------------- one-time parameter prep -----------------------
def prepare_spline_layer(knots, spline_weights, spline_scales,
                         spline_order=SPLINE_ORDER):
    """Hoisted, call-once preprocessing of layer parameters.

    Returns (coefs, w_flat) ready for `spline_linear_forward`.
    NOTE: repeated knots get a zero-denominator guard (PyTorch would emit NaN/Inf);
    benign for uniform knots but a documented semantic divergence.
    """
    knots = knots.astype(jnp.float32)                 # (D, G)
    D, G = knots.shape
    O = spline_weights.shape[0]
    n_coef = G - 1 - spline_order                     # K = 8
    n_slab = G - 1                                    # 11 order-0 slabs

    # Lane-dense slab width, padded up to a multiple of 128 lanes.
    W = -(-(n_slab * D) // 128) * 128                 # 384
    assert W % D == 0, "padded slab width must be a multiple of input_dim"
    n_slab_pad = W // D                               # 12

    zero = jnp.zeros((D,), jnp.float32)

    def pack(vals):                                   # n_slab_pad x (D,) -> (W,)
        return jnp.concatenate(vals, axis=0)

    def safe_inv(den):
        return jnp.where(den == 0, 0.0, 1.0 / jnp.where(den == 0, 1.0, den))

    rows = []
    # order-0 lo/hi knots; lo=hi=0 on padded slabs -> indicator is always 0 there.
    rows.append(pack([knots[:, j] if j < n_slab else zero for j in range(n_slab_pad)]))
    rows.append(pack([knots[:, j + 1] if j < n_slab else zero for j in range(n_slab_pad)]))

    # Per-level affine Cox-de Boor coefficients; invalid / padded slabs are zero.
    for k in range(1, spline_order + 1):
        a_s, b_s, c_s, d_s = [], [], [], []
        for j in range(n_slab_pad):
            if j < G - 1 - k:
                ld = knots[:, j + k] - knots[:, j]
                rd = knots[:, j + k + 1] - knots[:, j + 1]
                inv_ld = safe_inv(ld)
                inv_rd = safe_inv(rd)
                a_s.append(inv_ld)
                b_s.append(-knots[:, j] * inv_ld)
                c_s.append(-inv_rd)
                d_s.append(knots[:, j + k + 1] * inv_rd)
            else:
                a_s.append(zero); b_s.append(zero); c_s.append(zero); d_s.append(zero)
        rows.extend([pack(a_s), pack(b_s), pack(c_s), pack(d_s)])

    coefs = jnp.stack(rows, axis=0)                   # (2 + 4*order, W)
    n_rows = coefs.shape[0]
    n_rows_pad = -(-n_rows // 8) * 8                  # pad sublanes to multiple of 8
    if n_rows_pad != n_rows:
        coefs = jnp.pad(coefs, ((0, n_rows_pad - n_rows), (0, 0)))

    # Scaled spline weights, flattened slab-major / dim-minor; N padded to 128.
    scaled = spline_weights.astype(jnp.float32) * spline_scales.astype(jnp.float32)[:, :, None]
    w_flat = jnp.transpose(scaled, (2, 1, 0)).reshape(n_coef * D, O)
    o_pad = max(128, -(-O // 128) * 128)
    if o_pad != O:
        w_flat = jnp.pad(w_flat, ((0, 0), (0, o_pad - O)))

    return coefs, w_flat


# ----------------------------- forward wrapper --------------------------------
@functools.partial(jax.jit, static_argnames=("output_dim", "spline_order"))
def spline_linear_forward(x, coefs, w_flat, output_dim, spline_order=SPLINE_ORDER):
    """x: (B, D) f32.  Returns (B, output_dim) f32 spline output."""
    x = x.astype(jnp.float32)
    B, D = x.shape
    n_rows, W = coefs.shape
    KD, o_pad = w_flat.shape
    n_coef = KD // D
    n_slab_pad = W // D

    tb = _pick_batch_tile(B)
    grid = (pl.cdiv(B, tb),)

    kernel = functools.partial(spline_linear_kernel,
                               spline_order=spline_order,
                               n_slab_pad=n_slab_pad,
                               n_coef=n_coef)

    out_padded = pl.pallas_call(
        kernel,
        out_shape=jax.ShapeDtypeStruct((B, o_pad), jnp.float32),
        grid_spec=pltpu.PrefetchScalarGridSpec(
            num_scalar_prefetch=0,
            grid=grid,
            in_specs=[
                pl.BlockSpec((tb, D), lambda i: (i, 0)),          # x tile
                pl.BlockSpec((n_rows, W), lambda i: (0, 0)),      # packed knot/coef rows (full)
                pl.BlockSpec((KD, o_pad), lambda i: (0, 0)),      # flattened, N-padded weights
            ],
            out_specs=pl.BlockSpec((tb, o_pad), lambda i: (i, 0)),
        ),
        compiler_params=pltpu.CompilerParams(
            dimension_semantics=("parallel",)),
    )(x, coefs, w_flat)

    return out_padded[:, :output_dim]                 # drop the lane padding


# ----------------------------- pure-JAX reference ----------------------------
def _ref_b_splines(x, knots, spline_order):
    xe = x[:, :, None]
    bases = jnp.logical_and(xe >= knots[None, :, :-1],
                            xe < knots[None, :, 1:]).astype(x.dtype)
    for k in range(1, spline_order + 1):
        bases = (xe - knots[None, :, :-(k + 1)]) \
                / (knots[:, k:-1] - knots[:, :-(k + 1)])[None] * bases[:, :, :-1] \
              + (knots[None, :, k + 1:] - xe) \
                / (knots[:, k + 1:] - knots[:, 1:-k])[None] * bases[:, :, 1:]
    return bases


def _ref_forward(x, knots, spline_weights, spline_scales):
    bases = _ref_b_splines(x, knots, SPLINE_ORDER)            # (B, D, K)
    scaled = spline_weights * spline_scales[:, :, None]       # (O, D, K)
    return jnp.einsum("bdk,odk->bo", bases, scaled,
                      precision=jax.lax.Precision.HIGHEST)


# ----------------------------- main ------------------------------------------
if __name__ == "__main__":
    key = jax.random.PRNGKey(0)
    k_x, k_sw, k_ss = jax.random.split(key, 3)

    # knots (deterministic, matches _calculate_knots with grid_range=(-1, 1))
    h = (GRID_RANGE[1] - GRID_RANGE[0]) / NUM_KNOTS
    knots_1d = jnp.arange(-SPLINE_ORDER, NUM_KNOTS + SPLINE_ORDER + 1,
                          dtype=jnp.float32) * h + GRID_RANGE[0]
    knots = jnp.broadcast_to(knots_1d, (INPUT_DIM, N_KNOT_PTS))

    # parameters (deterministic synthetic init; shapes match the PyTorch module)
    # TODO(synk): PyTorch init uses xavier_uniform + lstsq curve fitting; here we use
    # deterministic random values of the same shapes (no checkpoint semantics implied).
    # base_weights / activation are dead code in forward() and are omitted entirely.
    spline_weights = jax.random.normal(k_sw, (OUTPUT_DIM, INPUT_DIM, N_COEF),
                                       jnp.float32) * 0.1
    spline_scales = jax.random.normal(k_ss, (OUTPUT_DIM, INPUT_DIM),
                                      jnp.float32) * 0.1

    # input inside the grid range (x == grid right endpoint would give a zero row,
    # faithfully matching the PyTorch half-open order-0 interval convention)
    x = jax.random.uniform(k_x, (BATCH, INPUT_DIM), jnp.float32,
                           minval=-0.95, maxval=0.95)

    # One-time parameter preprocessing (hoisted out of the forward hot path).
    coefs, w_flat = prepare_spline_layer(knots, spline_weights, spline_scales)

    out = spline_linear_forward(x, coefs, w_flat, output_dim=OUTPUT_DIM)
    out = jax.block_until_ready(out)

    ref = _ref_forward(x, knots, spline_weights, spline_scales)
    assert out.shape == (BATCH, OUTPUT_DIM)
    assert jnp.allclose(out, ref, atol=5e-5, rtol=1e-4), "mismatch vs reference"

    print("KERNEL_OK")
</pallas_src>

<mosaic_0001>
module attributes {stable_mosaic.version = 11 : i64} {
  func.func @spline_linear_kernel(%arg0: i32, %arg1: memref<16x32xf32, #tpu.memory_space<vmem>>, %arg2: memref<16x384xf32, #tpu.memory_space<vmem>>, %arg3: memref<256x128xf32, #tpu.memory_space<vmem>>, %arg4: memref<16x128xf32, #tpu.memory_space<vmem>>) attributes {dimension_semantics = [#tpu.dimension_semantics<parallel>], iteration_bounds = array<i64: 1>, scalar_prefetch = 0 : i64, scratch_operands = 0 : i64, tpu.core_type = #tpu.core_type<tc>, window_params = [{transform_indices = @transform_0, window_bounds = array<i64: 16, 32>}, {pipeline_mode = #tpu.pipeline_mode<synchronous>, transform_indices = @transform_1, window_bounds = array<i64: 16, 384>}, {pipeline_mode = #tpu.pipeline_mode<synchronous>, transform_indices = @transform_2, window_bounds = array<i64: 256, 128>}, {transform_indices = @transform_3, window_bounds = array<i64: 16, 128>}]} {
    %c0 = arith.constant 0 : index
    %c0_0 = arith.constant 0 : index
    %0 = vector.load %arg1[%c0, %c0_0] : memref<16x32xf32, #tpu.memory_space<vmem>>, vector<16x32xf32>
    %1 = tpu.concatenate %0, %0, %0, %0 in 1 : vector<16x32xf32>, vector<16x32xf32>, vector<16x32xf32>, vector<16x32xf32> -> vector<16x128xf32>
    %2 = tpu.concatenate %1, %1, %1 in 1 : vector<16x128xf32>, vector<16x128xf32>, vector<16x128xf32> -> vector<16x384xf32>
    %c0_1 = arith.constant 0 : index
    %c0_2 = arith.constant 0 : index
    %3 = vector.load %arg2[%c0_1, %c0_2] : memref<16x384xf32, #tpu.memory_space<vmem>>, vector<1x384xf32>
    %4 = vector.shape_cast %3 : vector<1x384xf32> to vector<384xf32>
    %c1 = arith.constant 1 : index
    %c0_3 = arith.constant 0 : index
    %5 = vector.load %arg2[%c1, %c0_3] : memref<16x384xf32, #tpu.memory_space<vmem>>, vector<1x384xf32>
    %6 = vector.shape_cast %5 : vector<1x384xf32> to vector<384xf32>
    %7 = vector.shape_cast %4 : vector<384xf32> to vector<1x384xf32>
    %8 = vector.broadcast %7 : vector<1x384xf32> to vector<16x384xf32>
    %9 = arith.cmpf oge, %2, %8 : vector<16x384xf32>
    %10 = vector.shape_cast %6 : vector<384xf32> to vector<1x384xf32>
    %11 = vector.broadcast %10 : vector<1x384xf32> to vector<16x384xf32>
    %12 = arith.cmpf olt, %2, %11 : vector<16x384xf32>
    %13 = arith.andi %9, %12 : vector<16x384xi1>
    %cst = arith.constant 1.000000e+00 : f32
    %cst_4 = arith.constant 0.000000e+00 : f32
    %14 = vector.broadcast %cst : f32 to vector<16x384xf32>
    %15 = vector.broadcast %cst_4 : f32 to vector<16x384xf32>
    %16 = arith.select %13, %14, %15 : vector<16x384xi1>, vector<16x384xf32>
    %c2 = arith.constant 2 : index
    %c0_5 = arith.constant 0 : index
    %17 = vector.load %arg2[%c2, %c0_5] : memref<16x384xf32, #tpu.memory_space<vmem>>, vector<1x384xf32>
    %18 = vector.shape_cast %17 : vector<1x384xf32> to vector<384xf32>
    %c3 = arith.constant 3 : index
    %c0_6 = arith.constant 0 : index
    %19 = vector.load %arg2[%c3, %c0_6] : memref<16x384xf32, #tpu.memory_space<vmem>>, vector<1x384xf32>
    %20 = vector.shape_cast %19 : vector<1x384xf32> to vector<384xf32>
    %c4 = arith.constant 4 : index
    %c0_7 = arith.constant 0 : index
    %21 = vector.load %arg2[%c4, %c0_7] : memref<16x384xf32, #tpu.memory_space<vmem>>, vector<1x384xf32>
    %22 = vector.shape_cast %21 : vector<1x384xf32> to vector<384xf32>
    %c5 = arith.constant 5 : index
    %c0_8 = arith.constant 0 : index
    %23 = vector.load %arg2[%c5, %c0_8] : memref<16x384xf32, #tpu.memory_space<vmem>>, vector<1x384xf32>
    %24 = vector.shape_cast %23 : vector<1x384xf32> to vector<384xf32>
    %c352_i32 = arith.constant 352 : i32
    %25 = tpu.dynamic_rotate %16 by %c352_i32 dim 1 : vector<16x384xf32>, i32 -> vector<16x384xf32>
    %26 = vector.shape_cast %18 : vector<384xf32> to vector<1x384xf32>
    %27 = vector.broadcast %26 : vector<1x384xf32> to vector<16x384xf32>
    %28 = arith.mulf %2, %27 : vector<16x384xf32>
    %29 = vector.shape_cast %20 : vector<384xf32> to vector<1x384xf32>
    %30 = vector.broadcast %29 : vector<1x384xf32> to vector<16x384xf32>
    %31 = arith.addf %28, %30 : vector<16x384xf32>
    %32 = arith.mulf %31, %16 : vector<16x384xf32>
    %33 = vector.shape_cast %22 : vector<384xf32> to vector<1x384xf32>
    %34 = vector.broadcast %33 : vector<1x384xf32> to vector<16x384xf32>
    %35 = arith.mulf %2, %34 : vector<16x384xf32>
    %36 = vector.shape_cast %24 : vector<384xf32> to vector<1x384xf32>
    %37 = vector.broadcast %36 : vector<1x384xf32> to vector<16x384xf32>
    %38 = arith.addf %35, %37 : vector<16x384xf32>
    %39 = arith.mulf %38, %25 : vector<16x384xf32>
    %40 = arith.addf %32, %39 : vector<16x384xf32>
    %c6 = arith.constant 6 : index
    %c0_9 = arith.constant 0 : index
    %41 = vector.load %arg2[%c6, %c0_9] : memref<16x384xf32, #tpu.memory_space<vmem>>, vector<1x384xf32>
    %42 = vector.shape_cast %41 : vector<1x384xf32> to vector<384xf32>
    %c7 = arith.constant 7 : index
    %c0_10 = arith.constant 0 : index
    %43 = vector.load %arg2[%c7, %c0_10] : memref<16x384xf32, #tpu.memory_space<vmem>>, vector<1x384xf32>
    %44 = vector.shape_cast %43 : vector<1x384xf32> to vector<384xf32>
    %c8 = arith.constant 8 : index
    %c0_11 = arith.constant 0 : index
    %45 = vector.load %arg2[%c8, %c0_11] : memref<16x384xf32, #tpu.memory_space<vmem>>, vector<1x384xf32>
    %46 = vector.shape_cast %45 : vector<1x384xf32> to vector<384xf32>
    %c9 = arith.constant 9 : index
    %c0_12 = arith.constant 0 : index
    %47 = vector.load %arg2[%c9, %c0_12] : memref<16x384xf32, #tpu.memory_space<vmem>>, vector<1x384xf32>
    %48 = vector.shape_cast %47 : vector<1x384xf32> to vector<384xf32>
    %c352_i32_13 = arith.constant 352 : i32
    %49 = tpu.dynamic_rotate %40 by %c352_i32_13 dim 1 : vector<16x384xf32>, i32 -> vector<16x384xf32>
    %50 = vector.shape_cast %42 : vector<384xf32> to vector<1x384xf32>
    %51 = vector.broadcast %50 : vector<1x384xf32> to vector<16x384xf32>
    %52 = arith.mulf %2, %51 : vector<16x384xf32>
    %53 = vector.shape_cast %44 : vector<384xf32> to vector<1x384xf32>
    %54 = vector.broadcast %53 : vector<1x384xf32> to vector<16x384xf32>
    %55 = arith.addf %52, %54 : vector<16x384xf32>
    %56 = arith.mulf %55, %40 : vector<16x384xf32>
    %57 = vector.shape_cast %46 : vector<384xf32> to vector<1x384xf32>
    %58 = vector.broadcast %57 : vector<1x384xf32> to vector<16x384xf32>
    %59 = arith.mulf %2, %58 : vector<16x384xf32>
    %60 = vector.shape_cast %48 : vector<384xf32> to vector<1x384xf32>
    %61 = vector.broadcast %60 : vector<1x384xf32> to vector<16x384xf32>
    %62 = arith.addf %59, %61 : vector<16x384xf32>
    %63 = arith.mulf %62, %49 : vector<16x384xf32>
    %64 = arith.addf %56, %63 : vector<16x384xf32>
    %c10 = arith.constant 10 : index
    %c0_14 = arith.constant 0 : index
    %65 = vector.load %arg2[%c10, %c0_14] : memref<16x384xf32, #tpu.memory_space<vmem>>, vector<1x384xf32>
    %66 = vector.shape_cast %65 : vector<1x384xf32> to vector<384xf32>
    %c11 = arith.constant 11 : index
    %c0_15 = arith.constant 0 : index
    %67 = vector.load %arg2[%c11, %c0_15] : memref<16x384xf32, #tpu.memory_space<vmem>>, vector<1x384xf32>
    %68 = vector.shape_cast %67 : vector<1x384xf32> to vector<384xf32>
    %c12 = arith.constant 12 : index
    %c0_16 = arith.constant 0 : index
    %69 = vector.load %arg2[%c12, %c0_16] : memref<16x384xf32, #tpu.memory_space<vmem>>, vector<1x384xf32>
    %70 = vector.shape_cast %69 : vector<1x384xf32> to vector<384xf32>
    %c13 = arith.constant 13 : index
    %c0_17 = arith.constant 0 : index
    %71 = vector.load %arg2[%c13, %c0_17] : memref<16x384xf32, #tpu.memory_space<vmem>>, vector<1x384xf32>
    %72 = vector.shape_cast %71 : vector<1x384xf32> to vector<384xf32>
    %c352_i32_18 = arith.constant 352 : i32
    %73 = tpu.dynamic_rotate %64 by %c352_i32_18 dim 1 : vector<16x384xf32>, i32 -> vector<16x384xf32>
    %74 = vector.shape_cast %66 : vector<384xf32> to vector<1x384xf32>
    %75 = vector.broadcast %74 : vector<1x384xf32> to vector<16x384xf32>
    %76 = arith.mulf %2, %75 : vector<16x384xf32>
    %77 = vector.shape_cast %68 : vector<384xf32> to vector<1x384xf32>
    %78 = vector.broadcast %77 : vector<1x384xf32> to vector<16x384xf32>
    %79 = arith.addf %76, %78 : vector<16x384xf32>
    %80 = arith.mulf %79, %64 : vector<16x384xf32>
    %81 = vector.shape_cast %70 : vector<384xf32> to vector<1x384xf32>
    %82 = vector.broadcast %81 : vector<1x384xf32> to vector<16x384xf32>
    %83 = arith.mulf %2, %82 : vector<16x384xf32>
    %84 = vector.shape_cast %72 : vector<384xf32> to vector<1x384xf32>
    %85 = vector.broadcast %84 : vector<1x384xf32> to vector<16x384xf32>
    %86 = arith.addf %83, %85 : vector<16x384xf32>
    %87 = arith.mulf %86, %73 : vector<16x384xf32>
    %88 = arith.addf %80, %87 : vector<16x384xf32>
    %89 = vector.extract_strided_slice %88 {offsets = [0, 0], sizes = [16, 256], strides = [1, 1]} : vector<16x384xf32> to vector<16x256xf32>
    %c0_19 = arith.constant 0 : index
    %c0_20 = arith.constant 0 : index
    %90 = vector.load %arg3[%c0_19, %c0_20] : memref<256x128xf32, #tpu.memory_space<vmem>>, vector<256x128xf32>
    %cst_21 = arith.constant dense<0.000000e+00> : vector<16x128xf32>
    %91 = tpu.matmul %89, %90, %cst_21 {dimension_numbers = #tpu.dot_dimension_numbers<[1], [0], [0], [1], [0, 0, 1, 1], [], []>} : vector<16x256xf32>, vector<256x128xf32>, vector<16x128xf32> -> vector<16x128xf32>
    %c0_22 = arith.constant 0 : index
    %c0_23 = arith.constant 0 : index
    %92 = vector.load %arg4[%c0_22, %c0_23] : memref<16x128xf32, #tpu.memory_space<vmem>>, vector<16x128xf32>
    tpu.vector_store %arg4[%c0_22, %c0_23], %91 {strides = array<i32>} : memref<16x128xf32, #tpu.memory_space<vmem>>, vector<16x128xf32>,
    return
  }
  func.func @transform_0(%arg0: i32) -> (i32, i32) {
    %c0_i32 = arith.constant 0 : i32
    %c0_i32_0 = arith.constant 0 : i32
    return %arg0, %c0_i32 : i32, i32
  }
  func.func @transform_1(%arg0: i32) -> (i32, i32) {
    %c0_i32 = arith.constant 0 : i32
    %c0_i32_0 = arith.constant 0 : i32
    %c0_i32_1 = arith.constant 0 : i32
    return %c0_i32, %c0_i32_0 : i32, i32
  }
  func.func @transform_2(%arg0: i32) -> (i32, i32) {
    %c0_i32 = arith.constant 0 : i32
    %c0_i32_0 = arith.constant 0 : i32
    %c0_i32_1 = arith.constant 0 : i32
    return %c0_i32, %c0_i32_0 : i32, i32
  }
  func.func @transform_3(%arg0: i32) -> (i32, i32) {
    %c0_i32 = arith.constant 0 : i32
    %c0_i32_0 = arith.constant 0 : i32
    return %arg0, %c0_i32 : i32, i32
  }
}

</mosaic_0001>

<llo_original>
// kernel: spline_linear_forward.1
$region0: #{spline_linear_forward.1}
  #allocation0 [shape = 'u32[]', space=smem, size = 0x4, offset = 0x4, fixed_abs, tag = 'smem constant byte address 0x4 - core index']
  #allocation1 [shape = 'u32[144,128]{1,0:T(1,128)}', space=vmem, size = 0x12000, scoped, tag = 'internal scratch']
  %s0 = inlined_call_operand.hbm [shape: f32[16,32], index: 0, kind: input, shape index: {}]
  %s1 = inlined_call_operand.hbm [shape: f32[16,384], index: 1, kind: input, shape index: {}]
  %s2 = inlined_call_operand.hbm [shape: f32[256,128], index: 2, kind: input, shape index: {}]
  %s3 = inlined_call_operand.hbm [shape: f32[16,128], index: 3, kind: output, shape index: {}]
  %s4 = sld [smem:[#allocation0]]
  $region34: #{spline_linear_forward.1} parent=0
    _
  %s6 = ssub.s32 1, %s4
  %s7 = scalar_select 0, %s6, %s4
  $region1: #{spline_linear_forward.1} parent=0
    #allocation2 [shape = 'u8[8192]{0}', space=vmem, size = 0x2000, scoped, tag = 'input window, operand 0, single buffered']
    #allocation3 [shape = 's32[1]{0}', space=sflag, size = 0x4, scoped, tag = 'scoped memory for spline_linear_forward.1']
    #allocation4 [shape = 's32[1]{0}', space=sflag, size = 0x4, scoped, tag = 'scoped memory for spline_linear_forward.1']
    #allocation5 [shape = 'u8[24576]{0}', space=vmem, size = 0x6000, scoped, tag = 'input window, operand 1, single buffered']
    #allocation6 [shape = 's32[1]{0}', space=sflag, size = 0x4, scoped, tag = 'scoped memory for spline_linear_forward.1']
    #allocation7 [shape = 'u8[131072]{0}', space=vmem, size = 0x20000, scoped, tag = 'input window, operand 2, single buffered']
    #allocation8 [shape = 'u8[8192]{0}', space=vmem, size = 0x2000, scoped, tag = 'output window, operand 0, single buffered']
    %8 = vsyncpa [#allocation3], 0
    %9 = vsyncpa [#allocation6], 0
    %10 = vsyncpa [#allocation4], 0
    // Predicated region
    $region2: #{spline_linear_forward.1} parent=1 // pred_check
      _
    $region3: #{spline_linear_forward.1} parent=1 // pred_check_branch
      %12 = sbr.rel (0) target = $region5
    $region4: #{spline_linear_forward.1} parent=1 // pred_region
      %s14 = ssub.s32 256, 256
      %15 = vsyncadd [#allocation3], %s14
      %s16 = sshll.u32 [#allocation2], 4
      %s17 = int_to_ptr.vmem [resolvable:$true] %s16
      %22 = dma.hbm_to_vmem [thread:$0]  %s0, 256, %s17, [#allocation3], 128, 128, 8
    $region5: #{spline_linear_forward.1} parent=1 // pred_fallthru
      _
    // Predicated region
    $region6: #{spline_linear_forward.1} parent=1 // pred_check
      _
    $region7: #{spline_linear_forward.1} parent=1 // pred_check_branch
      %24 = sbr.rel (0) target = $region9
    $region8: #{spline_linear_forward.1} parent=1 // pred_region
      %s26 = ssub.s32 768, 768
      %27 = vsyncadd [#allocation6], %s26
      %s28 = sshll.u32 [#allocation5], 4
      %s29 = int_to_ptr.vmem [resolvable:$true] %s28
      %34 = dma.hbm_to_vmem [thread:$0]  %s1, 768, %s29, [#allocation6], 384, 384, 24
    $region9: #{spline_linear_forward.1} parent=1 // pred_fallthru
      _
    // Predicated region
    $region10: #{spline_linear_forward.1} parent=1 // pred_check
      _
    $region11: #{spline_linear_forward.1} parent=1 // pred_check_branch
      %36 = sbr.rel (0) target = $region13
    $region12: #{spline_linear_forward.1} parent=1 // pred_region
      %s38 = ssub.s32 4096, 4096
      %39 = vsyncadd [#allocation6], %s38
      %s40 = sshll.u32 [#allocation7], 4
      %s41 = int_to_ptr.vmem [resolvable:$true] %s40
      %46 = dma.hbm_to_vmem [thread:$0]  %s2, 4096, %s41, [#allocation6], 128, 128, 8
    $region13: #{spline_linear_forward.1} parent=1 // pred_fallthru
      _
    // Predicated region
    $region14: #{spline_linear_forward.1} parent=1 // pred_check
      _
    $region15: #{spline_linear_forward.1} parent=1 // pred_check_branch
      %48 = sbr.rel (0) target = $region17
    $region16: #{spline_linear_forward.1} parent=1 // pred_region
      %49 = dma.done [#allocation3], 256
    $region17: #{spline_linear_forward.1} parent=1 // pred_fallthru
      _
    // Predicated region
    $region18: #{spline_linear_forward.1} parent=1 // pred_check
      _
    $region19: #{spline_linear_forward.1} parent=1 // pred_check_branch
      %51 = sbr.rel (0) target = $region21
    $region20: #{spline_linear_forward.1} parent=1 // pred_region
      %52 = dma.done [#allocation6], 768
    $region21: #{spline_linear_forward.1} parent=1 // pred_fallthru
      _
    // Predicated region
    $region22: #{spline_linear_forward.1} parent=1 // pred_check
      _
    $region23: #{spline_linear_forward.1} parent=1 // pred_check_branch
      %54 = sbr.rel (0) target = $region25
    $region24: #{spline_linear_forward.1} parent=1 // pred_region
      %55 = dma.done [#allocation6], 4096
    $region25: #{spline_linear_forward.1} parent=1 // pred_fallthru
      _
    %v56 = vld [vmem:[#allocation2] sm:$0xff]
    %v57 = vld [vmem:[#allocation2 + $0x8] sm:$0xff]
    %60 = vrot.lane.b32.xlu0 %v56, 32
    %v61 = vpop.permute.xlu0 %60
    %62 = vrot.lane.b32.xlu0 %v57, 32
    %v63 = vpop.permute.xlu0 %62
    %66 = vrot.lane.b32.xlu0 %v56, 64
    %v67 = vpop.permute.xlu0 %66
    %68 = vrot.lane.b32.xlu0 %v57, 64
    %v69 = vpop.permute.xlu0 %68
    %72 = vrot.lane.b32.xlu0 %v56, 96
    %v73 = vpop.permute.xlu0 %72
    %74 = vrot.lane.b32.xlu0 %v57, 96
    %v75 = vpop.permute.xlu0 %74
    %vm78 = vcmask 261120
    %v79 = vsel %vm78, %v56, %v61
    %v80 = vsel %vm78, %v57, %v63
    %vm81 = vcmask 523264
    %v82 = vsel %vm81, %v79, %v67
    %v83 = vsel %vm81, %v80, %v69
    %vm84 = vcmask 785408
    %v85 = vsel %vm84, %v82, %v73
    %v86 = vsel %vm84, %v83, %v75
    %v87 = vld [vmem:[#allocation5] ss:$8 sm:$0x7]
    %s88 = scalar_lea.vmem [#allocation5], 1
    %v89 = vld [vmem:[%s88] ss:$8 sm:$0x7]
    %v91 = vlaneseq
    %v92 = vshrl.u32 %v91, 7
    %v93 = vsub.s32 0, %v92
    %v94 = vrot.slane %v87, %v93
    %v95 = vlaneseq
    %v96 = vshrl.u32 %v95, 7
    %v97 = vsub.s32 1, %v96
    %v98 = vrot.slane %v87, %v97
    %v99 = vlaneseq
    %v100 = vshrl.u32 %v99, 7
    %v101 = vsub.s32 2, %v100
    %v102 = vrot.slane %v87, %v101
    %vm106 = vcmp.ge.f32.partialorder %v85, %v94
    %vm107 = vcmp.ge.f32.partialorder %v85, %v98
    %vm108 = vcmp.ge.f32.partialorder %v85, %v102
    %vm109 = vcmp.ge.f32.partialorder %v86, %v94
    %vm110 = vcmp.ge.f32.partialorder %v86, %v98
    %vm111 = vcmp.ge.f32.partialorder %v86, %v102
    %v113 = vlaneseq
    %v114 = vshrl.u32 %v113, 7
    %v115 = vsub.s32 0, %v114
    %v116 = vrot.slane %v89, %v115
    %v117 = vlaneseq
    %v118 = vshrl.u32 %v117, 7
    %v119 = vsub.s32 1, %v118
    %v120 = vrot.slane %v89, %v119
    %v121 = vlaneseq
    %v122 = vshrl.u32 %v121, 7
    %v123 = vsub.s32 2, %v122
    %v124 = vrot.slane %v89, %v123
    %vm128 = vcmp.lt.f32.partialorder %v85, %v116
    %vm129 = vcmp.lt.f32.partialorder %v85, %v120
    %vm130 = vcmp.lt.f32.partialorder %v85, %v124
    %vm131 = vcmp.lt.f32.partialorder %v86, %v116
    %vm132 = vcmp.lt.f32.partialorder %v86, %v120
    %vm133 = vcmp.lt.f32.partialorder %v86, %v124
    %vm134 = vmand %vm106, %vm128
    %vm135 = vmand %vm107, %vm129
    %vm136 = vmand %vm108, %vm130
    %vm137 = vmand %vm109, %vm131
    %vm138 = vmand %vm110, %vm132
    %vm139 = vmand %vm111, %vm133
    %v140 = vsel %vm134, 1.0, 0.0
    %v141 = vsel %vm135, 1.0, 0.0
    %v142 = vsel %vm136, 1.0, 0.0
    %v143 = vsel %vm137, 1.0, 0.0
    %v144 = vsel %vm138, 1.0, 0.0
    %v145 = vsel %vm139, 1.0, 0.0
    %s146 = scalar_lea.vmem [#allocation5], 2
    %v147 = vld [vmem:[%s146] ss:$8 sm:$0x7]
    %s148 = scalar_lea.vmem [#allocation5], 3
    %v149 = vld [vmem:[%s148] ss:$8 sm:$0x7]
    %s150 = scalar_lea.vmem [#allocation5], 4
    %v151 = vld [vmem:[%s150] ss:$8 sm:$0x7]
    %s152 = scalar_lea.vmem [#allocation5], 5
    %v153 = vld [vmem:[%s152] ss:$8 sm:$0x7]
    %154 = vrot.lane.b32.xlu0 %v140, 96
    %v155 = vpop.permute.xlu0 %154
    %156 = vrot.lane.b32.xlu0 %v143, 96
    %v157 = vpop.permute.xlu0 %156
    %158 = vrot.lane.b32.xlu0 %v141, 96
    %v159 = vpop.permute.xlu0 %158
    %160 = vrot.lane.b32.xlu0 %v144, 96
    %v161 = vpop.permute.xlu0 %160
    %162 = vrot.lane.b32.xlu0 %v142, 96
    %v163 = vpop.permute.xlu0 %162
    %164 = vrot.lane.b32.xlu0 %v145, 96
    %v165 = vpop.permute.xlu0 %164
    %v166 = vlaneseq
    %v167 = vand.u32 %v166, 127
    %vm168 = vcmp.lt.s32.totalorder %v167, 96
    %v169 = vsel %vm168, %v159, %v163
    %v170 = vsel %vm168, %v161, %v165
    %v171 = vsel %vm168, %v155, %v159
    %v172 = vsel %vm168, %v157, %v161
    %v173 = vsel %vm168, %v163, %v155
    %v174 = vsel %vm168, %v165, %v157
    %v176 = vlaneseq
    %v177 = vshrl.u32 %v176, 7
    %v178 = vsub.s32 0, %v177
    %v179 = vrot.slane %v147, %v178
    %v180 = vlaneseq
    %v181 = vshrl.u32 %v180, 7
    %v182 = vsub.s32 1, %v181
    %v183 = vrot.slane %v147, %v182
    %v184 = vlaneseq
    %v185 = vshrl.u32 %v184, 7
    %v186 = vsub.s32 2, %v185
    %v187 = vrot.slane %v147, %v186
    %v191 = vmul.f32 %v85, %v179
    %v192 = vmul.f32 %v85, %v183
    %v193 = vmul.f32 %v85, %v187
    %v194 = vmul.f32 %v86, %v179
    %v195 = vmul.f32 %v86, %v183
    %v196 = vmul.f32 %v86, %v187
    %v198 = vlaneseq
    %v199 = vshrl.u32 %v198, 7
    %v200 = vsub.s32 0, %v199
    %v201 = vrot.slane %v149, %v200
    %v202 = vlaneseq
    %v203 = vshrl.u32 %v202, 7
    %v204 = vsub.s32 1, %v203
    %v205 = vrot.slane %v149, %v204
    %v206 = vlaneseq
    %v207 = vshrl.u32 %v206, 7
    %v208 = vsub.s32 2, %v207
    %v209 = vrot.slane %v149, %v208
    %v213 = vadd.f32 %v191, %v201
    %v214 = vadd.f32 %v192, %v205
    %v215 = vadd.f32 %v193, %v209
    %v216 = vadd.f32 %v194, %v201
    %v217 = vadd.f32 %v195, %v205
    %v218 = vadd.f32 %v196, %v209
    %v219 = vmul.f32 %v213, %v140
    %v220 = vmul.f32 %v214, %v141
    %v221 = vmul.f32 %v215, %v142
    %v222 = vmul.f32 %v216, %v143
    %v223 = vmul.f32 %v217, %v144
    %v224 = vmul.f32 %v218, %v145
    %v226 = vlaneseq
    %v227 = vshrl.u32 %v226, 7
    %v228 = vsub.s32 0, %v227
    %v229 = vrot.slane %v151, %v228
    %v230 = vlaneseq
    %v231 = vshrl.u32 %v230, 7
    %v232 = vsub.s32 1, %v231
    %v233 = vrot.slane %v151, %v232
    %v234 = vlaneseq
    %v235 = vshrl.u32 %v234, 7
    %v236 = vsub.s32 2, %v235
    %v237 = vrot.slane %v151, %v236
    %v241 = vmul.f32 %v85, %v229
    %v242 = vmul.f32 %v85, %v233
    %v243 = vmul.f32 %v85, %v237
    %v244 = vmul.f32 %v86, %v229
    %v245 = vmul.f32 %v86, %v233
    %v246 = vmul.f32 %v86, %v237
    %v248 = vlaneseq
    %v249 = vshrl.u32 %v248, 7
    %v250 = vsub.s32 0, %v249
    %v251 = vrot.slane %v153, %v250
    %v252 = vlaneseq
    %v253 = vshrl.u32 %v252, 7
    %v254 = vsub.s32 1, %v253
    %v255 = vrot.slane %v153, %v254
    %v256 = vlaneseq
    %v257 = vshrl.u32 %v256, 7
    %v258 = vsub.s32 2, %v257
    %v259 = vrot.slane %v153, %v258
    %v263 = vadd.f32 %v241, %v251
    %v264 = vadd.f32 %v242, %v255
    %v265 = vadd.f32 %v243, %v259
    %v266 = vadd.f32 %v244, %v251
    %v267 = vadd.f32 %v245, %v255
    %v268 = vadd.f32 %v246, %v259
    %v269 = vmul.f32 %v263, %v171
    %v270 = vmul.f32 %v264, %v169
    %v271 = vmul.f32 %v265, %v173
    %v272 = vmul.f32 %v266, %v172
    %v273 = vmul.f32 %v267, %v170
    %v274 = vmul.f32 %v268, %v174
    %v275 = vadd.f32 %v219, %v269
    %v276 = vadd.f32 %v220, %v270
    %v277 = vadd.f32 %v221, %v271
    %v278 = vadd.f32 %v222, %v272
    %v279 = vadd.f32 %v223, %v273
    %v280 = vadd.f32 %v224, %v274
    %s281 = scalar_lea.vmem [#allocation5], 6
    %v282 = vld [vmem:[%s281] ss:$8 sm:$0x7]
    %s283 = scalar_lea.vmem [#allocation5], 7
    %v284 = vld [vmem:[%s283] ss:$8 sm:$0x7]
    %s285 = scalar_lea.vmem [#allocation5], 24
    %v286 = vld [vmem:[%s285] ss:$8 sm:$0x7]
    %s287 = scalar_lea.vmem [#allocation5], 25
    %v288 = vld [vmem:[%s287] ss:$8 sm:$0x7]
    %289 = vrot.lane.b32.xlu0 %v275, 96
    %v290 = vpop.permute.xlu0 %289
    %291 = vrot.lane.b32.xlu0 %v278, 96
    %v292 = vpop.permute.xlu0 %291
    %293 = vrot.lane.b32.xlu0 %v276, 96
    %v294 = vpop.permute.xlu0 %293
    %295 = vrot.lane.b32.xlu0 %v279, 96
    %v296 = vpop.permute.xlu0 %295
    %297 = vrot.lane.b32.xlu0 %v277, 96
    %v298 = vpop.permute.xlu0 %297
    %299 = vrot.lane.b32.xlu0 %v280, 96
    %v300 = vpop.permute.xlu0 %299
    %v301 = vsel %vm168, %v294, %v298
    %v302 = vsel %vm168, %v296, %v300
    %v303 = vsel %vm168, %v290, %v294
    %v304 = vsel %vm168, %v292, %v296
    %v305 = vsel %vm168, %v298, %v290
    %v306 = vsel %vm168, %v300, %v292
    %v308 = vlaneseq
    %v309 = vshrl.u32 %v308, 7
    %v310 = vsub.s32 0, %v309
    %v311 = vrot.slane %v282, %v310
    %v312 = vlaneseq
    %v313 = vshrl.u32 %v312, 7
    %v314 = vsub.s32 1, %v313
    %v315 = vrot.slane %v282, %v314
    %v316 = vlaneseq
    %v317 = vshrl.u32 %v316, 7
    %v318 = vsub.s32 2, %v317
    %v319 = vrot.slane %v282, %v318
    %v323 = vmul.f32 %v85, %v311
    %v324 = vmul.f32 %v85, %v315
    %v325 = vmul.f32 %v85, %v319
    %v326 = vmul.f32 %v86, %v311
    %v327 = vmul.f32 %v86, %v315
    %v328 = vmul.f32 %v86, %v319
    %v330 = vlaneseq
    %v331 = vshrl.u32 %v330, 7
    %v332 = vsub.s32 0, %v331
    %v333 = vrot.slane %v284, %v332
    %v334 = vlaneseq
    %v335 = vshrl.u32 %v334, 7
    %v336 = vsub.s32 1, %v335
    %v337 = vrot.slane %v284, %v336
    %v338 = vlaneseq
    %v339 = vshrl.u32 %v338, 7
    %v340 = vsub.s32 2, %v339
    %v341 = vrot.slane %v284, %v340
    %v345 = vadd.f32 %v323, %v333
    %v346 = vadd.f32 %v324, %v337
    %v347 = vadd.f32 %v325, %v341
    %v348 = vadd.f32 %v326, %v333
    %v349 = vadd.f32 %v327, %v337
    %v350 = vadd.f32 %v328, %v341
    %v351 = vmul.f32 %v345, %v275
    %v352 = vmul.f32 %v346, %v276
    %v353 = vmul.f32 %v347, %v277
    %v354 = vmul.f32 %v348, %v278
    %v355 = vmul.f32 %v349, %v279
    %v356 = vmul.f32 %v350, %v280
    %v358 = vlaneseq
    %v359 = vshrl.u32 %v358, 7
    %v360 = vsub.s32 0, %v359
    %v361 = vrot.slane %v286, %v360
    %v362 = vlaneseq
    %v363 = vshrl.u32 %v362, 7
    %v364 = vsub.s32 1, %v363
    %v365 = vrot.slane %v286, %v364
    %v366 = vlaneseq
    %v367 = vshrl.u32 %v366, 7
    %v368 = vsub.s32 2, %v367
    %v369 = vrot.slane %v286, %v368
    %v373 = vmul.f32 %v85, %v361
    %v374 = vmul.f32 %v85, %v365
    %v375 = vmul.f32 %v85, %v369
    %v376 = vmul.f32 %v86, %v361
    %v377 = vmul.f32 %v86, %v365
    %v378 = vmul.f32 %v86, %v369
    %v380 = vlaneseq
    %v381 = vshrl.u32 %v380, 7
    %v382 = vsub.s32 0, %v381
    %v383 = vrot.slane %v288, %v382
    %v384 = vlaneseq
    %v385 = vshrl.u32 %v384, 7
    %v386 = vsub.s32 1, %v385
    %v387 = vrot.slane %v288, %v386
    %v388 = vlaneseq
    %v389 = vshrl.u32 %v388, 7
    %v390 = vsub.s32 2, %v389
    %v391 = vrot.slane %v288, %v390
    %v395 = vadd.f32 %v373, %v383
    %v396 = vadd.f32 %v374, %v387
    %v397 = vadd.f32 %v375, %v391
    %v398 = vadd.f32 %v376, %v383
    %v399 = vadd.f32 %v377, %v387
    %v400 = vadd.f32 %v378, %v391
    %v401 = vmul.f32 %v395, %v303
    %v402 = vmul.f32 %v396, %v301
    %v403 = vmul.f32 %v397, %v305
    %v404 = vmul.f32 %v398, %v304
    %v405 = vmul.f32 %v399, %v302
    %v406 = vmul.f32 %v400, %v306
    %v407 = vadd.f32 %v351, %v401
    %v408 = vadd.f32 %v352, %v402
    %v409 = vadd.f32 %v353, %v403
    %v410 = vadd.f32 %v354, %v404
    %v411 = vadd.f32 %v355, %v405
    %v412 = vadd.f32 %v356, %v406
    %s413 = scalar_lea.vmem [#allocation5], 26
    %v414 = vld [vmem:[%s413] ss:$8 sm:$0x7]
    %s415 = scalar_lea.vmem [#allocation5], 27
    %v416 = vld [vmem:[%s415] ss:$8 sm:$0x7]
    %s417 = scalar_lea.vmem [#allocation5], 28
    %v418 = vld [vmem:[%s417] ss:$8 sm:$0x7]
    %s419 = scalar_lea.vmem [#allocation5], 29
    %v420 = vld [vmem:[%s419] ss:$8 sm:$0x7]
    %421 = vrot.lane.b32.xlu0 %v407, 96
    %v422 = vpop.permute.xlu0 %421
    %423 = vrot.lane.b32.xlu0 %v410, 96
    %v424 = vpop.permute.xlu0 %423
    %425 = vrot.lane.b32.xlu0 %v408, 96
    %v426 = vpop.permute.xlu0 %425
    %427 = vrot.lane.b32.xlu0 %v411, 96
    %v428 = vpop.permute.xlu0 %427
    %429 = vrot.lane.b32.xlu0 %v409, 96
    %v430 = vpop.permute.xlu0 %429
    %431 = vrot.lane.b32.xlu0 %v412, 96
    %v432 = vpop.permute.xlu0 %431
    %v433 = vsel %vm168, %v426, %v430
    %v434 = vsel %vm168, %v428, %v432
    %v435 = vsel %vm168, %v422, %v426
    %v436 = vsel %vm168, %v424, %v428
    %v438 = vlaneseq
    %v439 = vshrl.u32 %v438, 7
    %v440 = vsub.s32 0, %v439
    %v441 = vrot.slane %v414, %v440
    %v442 = vlaneseq
    %v443 = vshrl.u32 %v442, 7
    %v444 = vsub.s32 1, %v443
    %v445 = vrot.slane %v414, %v444
    %v448 = vmul.f32 %v85, %v441
    %v449 = vmul.f32 %v85, %v445
    %v450 = vmul.f32 %v86, %v441
    %v451 = vmul.f32 %v86, %v445
    %v453 = vlaneseq
    %v454 = vshrl.u32 %v453, 7
    %v455 = vsub.s32 0, %v454
    %v456 = vrot.slane %v416, %v455
    %v457 = vlaneseq
    %v458 = vshrl.u32 %v457, 7
    %v459 = vsub.s32 1, %v458
    %v460 = vrot.slane %v416, %v459
    %v463 = vadd.f32 %v448, %v456
    %v464 = vadd.f32 %v449, %v460
    %v465 = vadd.f32 %v450, %v456
    %v466 = vadd.f32 %v451, %v460
    %v467 = vmul.f32 %v463, %v407
    %v468 = vmul.f32 %v464, %v408
    %v469 = vmul.f32 %v465, %v410
    %v470 = vmul.f32 %v466, %v411
    %v472 = vlaneseq
    %v473 = vshrl.u32 %v472, 7
    %v474 = vsub.s32 0, %v473
    %v475 = vrot.slane %v418, %v474
    %v476 = vlaneseq
    %v477 = vshrl.u32 %v476, 7
    %v478 = vsub.s32 1, %v477
    %v479 = vrot.slane %v418, %v478
    %v482 = vmul.f32 %v85, %v475
    %v483 = vmul.f32 %v85, %v479
    %v484 = vmul.f32 %v86, %v475
    %v485 = vmul.f32 %v86, %v479
    %v487 = vlaneseq
    %v488 = vshrl.u32 %v487, 7
    %v489 = vsub.s32 0, %v488
    %v490 = vrot.slane %v420, %v489
    %v491 = vlaneseq
    %v492 = vshrl.u32 %v491, 7
    %v493 = vsub.s32 1, %v492
    %v494 = vrot.slane %v420, %v493
    %v497 = vadd.f32 %v482, %v490
    %v498 = vadd.f32 %v483, %v494
    %v499 = vadd.f32 %v484, %v490
    %v500 = vadd.f32 %v485, %v494
    %v501 = vmul.f32 %v497, %v435
    %v502 = vmul.f32 %v498, %v433
    %v503 = vmul.f32 %v499, %v436
    %v504 = vmul.f32 %v500, %v434
    %v505 = vadd.f32 %v467, %v501
    %v506 = vadd.f32 %v468, %v502
    %v507 = vadd.f32 %v469, %v503
    %v508 = vadd.f32 %v470, %v504
    %v509 = vld [vmem:[#allocation7] sm:$0xff]
    %v510 = vld [vmem:[#allocation7 + $0x8] sm:$0xff]
    %v511 = vld [vmem:[#allocation7 + $0x10] sm:$0xff]
    %v512 = vld [vmem:[#allocation7 + $0x18] sm:$0xff]
    %v513 = vld [vmem:[#allocation7 + $0x20] sm:$0xff]
    %v514 = vld [vmem:[#allocation7 + $0x28] sm:$0xff]
    %v515 = vld [vmem:[#allocation7 + $0x30] sm:$0xff]
    %v516 = vld [vmem:[#allocation7 + $0x38] sm:$0xff]
    %v517 = vld [vmem:[#allocation7 + $0x40] sm:$0xff]
    %v518 = vld [vmem:[#allocation7 + $0x48] sm:$0xff]
    %v519 = vld [vmem:[#allocation7 + $0x50] sm:$0xff]
    %v520 = vld [vmem:[#allocation7 + $0x58] sm:$0xff]
    %v521 = vld [vmem:[#allocation7 + $0x60] sm:$0xff]
    %v522 = vld [vmem:[#allocation7 + $0x68] sm:$0xff]
    %v523 = vld [vmem:[#allocation7 + $0x70] sm:$0xff]
    %v524 = vld [vmem:[#allocation7 + $0x78] sm:$0xff]
    %v525 = vld [vmem:[#allocation7 + $0x80] sm:$0xff]
    %v526 = vld [vmem:[#allocation7 + $0x88] sm:$0xff]
    %v527 = vld [vmem:[#allocation7 + $0x90] sm:$0xff]
    %v528 = vld [vmem:[#allocation7 + $0x98] sm:$0xff]
    %v529 = vld [vmem:[#allocation7 + $0xa0] sm:$0xff]
    %v530 = vld [vmem:[#allocation7 + $0xa8] sm:$0xff]
    %v531 = vld [vmem:[#allocation7 + $0xb0] sm:$0xff]
    %v532 = vld [vmem:[#allocation7 + $0xb8] sm:$0xff]
    %v533 = vld [vmem:[#allocation7 + $0xc0] sm:$0xff]
    %v534 = vld [vmem:[#allocation7 + $0xc8] sm:$0xff]
    %v535 = vld [vmem:[#allocation7 + $0xd0] sm:$0xff]
    %v536 = vld [vmem:[#allocation7 + $0xd8] sm:$0xff]
    %v537 = vld [vmem:[#allocation7 + $0xe0] sm:$0xff]
    %v538 = vld [vmem:[#allocation7 + $0xe8] sm:$0xff]
    %v539 = vld [vmem:[#allocation7 + $0xf0] sm:$0xff]
    %v540 = vld [vmem:[#allocation7 + $0xf8] sm:$0xff]
    %541 = vmatprep.subr.mxu0 0.0
    %542 = vmatpush1.msra.mxu0 %v509
    %543 = vmatprep.subr.mxu0 0.0
    %544 = vmatpush1.msra.mxu0 %v510
    %545 = vmatprep.subr.mxu0 0.0
    %546 = vmatpush1.msra.mxu0 %v511
    %547 = vmatprep.subr.mxu0 0.0
    %548 = vmatpush1.msra.mxu0 %v512
    %549 = vmatprep.subr.mxu0 0.0
    %550 = vmatpush1.msra.mxu0 %v513
    %551 = vmatprep.subr.mxu0 0.0
    %552 = vmatpush1.msra.mxu0 %v514
    %553 = vmatprep.subr.mxu0 0.0
    %554 = vmatpush1.msra.mxu0 %v515
    %555 = vmatprep.subr.mxu0 0.0
    %556 = vmatpush1.msra.mxu0 %v516
    %557 = vmatprep.subr.mxu0 0.0
    %558 = vmatpush1.msra.mxu0 %v517
    %559 = vmatprep.subr.mxu0 0.0
    %560 = vmatpush1.msra.mxu0 %v518
    %561 = vmatprep.subr.mxu0 0.0
    %562 = vmatpush1.msra.mxu0 %v519
    %563 = vmatprep.subr.mxu0 0.0
    %564 = vmatpush1.msra.mxu0 %v520
    %565 = vmatprep.subr.mxu0 0.0
    %566 = vmatpush1.msra.mxu0 %v521
    %567 = vmatprep.subr.mxu0 0.0
    %568 = vmatpush1.msra.mxu0 %v522
    %569 = vmatprep.subr.mxu0 0.0
    %570 = vmatpush1.msra.mxu0 %v523
    %571 = vmatprep.subr.mxu0 0.0
    %572 = vmatpush1.msra.mxu0 %v524
    %573 = vmatprep.subr.mxu0 0.0
    %574 = vmatpush1.msra.mxu0 %v525
    %575 = vmatprep.subr.mxu0 0.0
    %576 = vmatpush1.msra.mxu0 %v526
    %577 = vmatprep.subr.mxu0 0.0
    %578 = vmatpush1.msra.mxu0 %v527
    %579 = vmatprep.subr.mxu0 0.0
    %580 = vmatpush1.msra.mxu0 %v528
    %581 = vmatprep.subr.mxu0 0.0
    %582 = vmatpush1.msra.mxu0 %v529
    %583 = vmatprep.subr.mxu0 0.0
    %584 = vmatpush1.msra.mxu0 %v530
    %585 = vmatprep.subr.mxu0 0.0
    %586 = vmatpush1.msra.mxu0 %v531
    %587 = vmatprep.subr.mxu0 0.0
    %588 = vmatpush1.msra.mxu0 %v532
    %589 = vmatprep.subr.mxu0 0.0
    %590 = vmatpush1.msra.mxu0 %v533
    %591 = vmatprep.subr.mxu0 0.0
    %592 = vmatpush1.msra.mxu0 %v534
    %593 = vmatprep.subr.mxu0 0.0
    %594 = vmatpush1.msra.mxu0 %v535
    %595 = vmatprep.subr.mxu0 0.0
    %596 = vmatpush1.msra.mxu0 %v536
    %597 = vmatprep.subr.mxu0 0.0
    %598 = vmatpush1.msra.mxu0 %v537
    %599 = vmatprep.subr.mxu0 0.0
    %600 = vmatpush1.msra.mxu0 %v538
    %601 = vmatprep.subr.mxu0 0.0
    %602 = vmatpush1.msra.mxu0 %v539
    %603 = vmatprep.subr.mxu0 0.0
    %604 = vmatpush1.msra.mxu0 %v540
    %605 = vmatprep.mubr.f32.mxu0 %v506
    %606 = vmatmul.mubr.f32.gmra.mrb[0].mxu0 %v505
    %v607 = vpop.f32.mrb[0].mxu0
    %v608 = vadd.f32 0.0, %v607
    %v609 = vpop.f32.mrb[0].mxu0
    %610 = vmatprep.mubr.f32.mxu0 %v508
    %611 = vmatmul.mubr.f32.gmra.mrb[0].mxu0 %v507
    %v612 = vpop.f32.mrb[0].mxu0
    %v613 = vadd.f32 0.0, %v612
    %v614 = vpop.f32.mrb[0].mxu0
    %615 = vdwg.mxu0
    %616 = vst [vmem:[#allocation8] sm:$0xff] %v608
    %617 = vst [vmem:[#allocation8 + $0x8] sm:$0xff] %v613
    // Predicated region
    $region26: #{spline_linear_forward.1} parent=1 // pred_check
      _
    $region27: #{spline_linear_forward.1} parent=1 // pred_check_branch
      %619 = sbr.rel (0) target = $region29
    $region28: #{spline_linear_forward.1} parent=1 // pred_region
      %s621 = ssub.s32 256, 256
      %622 = vsyncadd [#allocation4], %s621
      %s623 = sshll.u32 [#allocation8], 4
      %s624 = int_to_ptr.vmem [resolvable:$true] %s623
      %629 = dma.vmem_to_hbm [thread:$0]  %s624, 256, %s3, [#allocation4], 128, 128, 8
    $region29: #{spline_linear_forward.1} parent=1 // pred_fallthru
      _
    // Predicated region
    $region30: #{spline_linear_forward.1} parent=1 // pred_check
      _
    $region31: #{spline_linear_forward.1} parent=1 // pred_check_branch
      %631 = sbr.rel (0) target = $region33
    $region32: #{spline_linear_forward.1} parent=1 // pred_region
      %632 = dma.done [#allocation4], 256
    $region33: #{spline_linear_forward.1} parent=1 // pred_fallthru
      _
    %633 = vsyncpa [#allocation3], 1
    %634 = vsyncpa [#allocation6], 1
    %635 = vsyncpa [#allocation4], 1

</llo_original>
